<compile_context>
chip_gen: v6e
topology: v6e:2x2x1
jax: 0.10.0
libtpu: 0.0.40
codegen_flags: <defaults>
</compile_context>

<pallas_src>
import numpy as np
import jax
import jax.numpy as jnp
from jax.experimental import pallas as pl
from jax.experimental.pallas import tpu as pltpu


def _round_up(x, m):
    return (x + m - 1) // m * m


def _sublane_multiple(dtype):
    """Sublane packing multiple: 8 for 32-bit, 16 for bf16, 32 for int8/fp8."""
    return max(8, 32 // np.dtype(dtype).itemsize)


def _svd_lora_kernel(x_ref, w_ref, xu_ref, lvt_ref, o_ref, acc_ref):
    """One (tm, tn) output tile, accumulated over the K grid axis.

    x_ref:   (tm, tk)      activations slab
    w_ref:   (tk, tn)      frozen reconstructed weight tile
    xu_ref:  (tm, r_pad)   precomputed x @ (lora_u * diag(s))  (k-invariant)
    lvt_ref: (r_pad, tn)   lora_vt tile                        (k-invariant)
    o_ref:   (tm, tn)      output tile
    acc_ref: (tm, tn) f32  accumulator scratch (persists across K steps)
    """
    k = pl.program_id(2)

    @pl.when(k == 0)
    def _():
        # Initialize the accumulator with the LoRA contribution ONCE per
        # (i, j) tile instead of zero + add on every K step.
        acc_ref[...] = jnp.dot(xu_ref[...], lvt_ref[...],
                               preferred_element_type=jnp.float32)

    # Steady state: exactly one MXU dot + one accumulator update per K step.
    acc_ref[...] += jnp.dot(x_ref[...], w_ref[...],
                            preferred_element_type=jnp.float32)

    @pl.when(k == pl.num_programs(2) - 1)
    def _():
        o_ref[...] = acc_ref[...].astype(o_ref.dtype)


def prepare_svd_lora(orig_weight, lora_u, lora_s, lora_vt,
                     *, tn=512, tk=1024, compute_dtype=None):
    """One-time parameter preparation (do NOT redo per forward call).

    Folds lora_s into lora_u, casts to the compute dtype, and zero-pads the
    frozen weight / lora_vt to tile multiples.
    """
    in_features, out_features = orig_weight.shape
    rank = int(lora_s.shape[0])
    compute_dtype = (orig_weight.dtype if compute_dtype is None
                     else np.dtype(compute_dtype))
    sub = _sublane_multiple(compute_dtype)

    # Lane-dense tile bases; never above (padded) array extents.
    tn = min(tn, _round_up(out_features, 128))
    tk = min(tk, _round_up(in_features, 128))
    r_pad = _round_up(rank, sub)

    Np = _round_up(out_features, tn)
    Kp = _round_up(in_features, tk)

    # Fold singular values: ((x@U)*s)@Vt == (x@(U*diag(s)))@Vt.
    lora_us = (lora_u * lora_s[None, :]).astype(compute_dtype)      # (K, r)

    w_p = jnp.pad(orig_weight.astype(compute_dtype),
                  ((0, Kp - in_features), (0, Np - out_features)))
    lvt_p = jnp.pad(lora_vt.astype(compute_dtype),
                    ((0, r_pad - rank), (0, Np - out_features)))

    return dict(w_p=w_p, lvt_p=lvt_p, lora_us=lora_us,
                in_features=in_features, out_features=out_features,
                rank=rank, r_pad=r_pad, tn=tn, tk=tk, Np=Np, Kp=Kp,
                compute_dtype=compute_dtype)


def svd_lora_forward(x, params, *, tm=512):
    """Flattens leading dims, pads x per call, runs the Pallas kernel."""
    p = params
    in_features, out_features = p["in_features"], p["out_features"]
    rank, r_pad = p["rank"], p["r_pad"]
    tn, tk, Np, Kp = p["tn"], p["tk"], p["Np"], p["Kp"]
    compute_dtype = p["compute_dtype"]
    out_dtype = x.dtype
    sub = _sublane_multiple(compute_dtype)

    lead = x.shape[:-1]
    M = int(np.prod(lead)) if lead else 1
    x2 = x.reshape(M, in_features).astype(compute_dtype)

    # LoRA first matmul hoisted out of the grid: rank-wide, tiny (M*K*r flops),
    # vs. a full MXU slab per (i, j, k) grid point if done inside the kernel.
    xu = jnp.dot(x2, p["lora_us"],
                 preferred_element_type=jnp.float32).astype(compute_dtype)

    tm = min(tm, _round_up(M, sub))
    Mp = _round_up(M, tm)

    # Dual-TensorCore chips (v7x): if the M axis gives only one block, split N
    # (keeping tn a multiple of 128 that still divides Np) to expose >= 2
    # parallel grid points.
    if Mp // tm < 2:
        while (Np // tn) < 2 and tn % 256 == 0:
            tn //= 2

    # Zero-pad activations to tile multiples (zero rows/cols contribute 0).
    x_p = jnp.pad(x2, ((0, Mp - M), (0, Kp - in_features)))
    xu_p = jnp.pad(xu, ((0, Mp - M), (0, r_pad - rank)))

    grid = (Mp // tm, Np // tn, Kp // tk)

    cbytes = np.dtype(compute_dtype).itemsize
    obytes = np.dtype(out_dtype).itemsize

    # Explicit VMEM budget: double-buffered inputs/outputs + f32 accumulator.
    footprint = ((tm * tk + tk * tn + tm * r_pad + r_pad * tn) * 2 * cbytes
                 + tm * tn * 2 * obytes + tm * tn * 4)
    vmem_limit = int(min(128 * 1024 * 1024,
                         max(32 * 1024 * 1024, footprint * 3 // 2)))

    flops = 2 * Mp * Kp * Np + 2 * Mp * r_pad * Np
    bytes_accessed = int((Mp * Kp + Kp * Np + Mp * r_pad + r_pad * Np) * cbytes
                         + Mp * Np * obytes)

    out = pl.pallas_call(
        _svd_lora_kernel,
        out_shape=jax.ShapeDtypeStruct((Mp, Np), out_dtype),
        grid_spec=pltpu.PrefetchScalarGridSpec(
            num_scalar_prefetch=0,
            grid=grid,
            in_specs=[
                pl.BlockSpec((tm, tk), lambda i, j, k: (i, k)),       # x
                pl.BlockSpec((tk, tn), lambda i, j, k: (k, j)),       # W
                pl.BlockSpec((tm, r_pad), lambda i, j, k: (i, 0)),    # x @ (U*s)
                pl.BlockSpec((r_pad, tn), lambda i, j, k: (0, j)),    # Vt
            ],
            out_specs=pl.BlockSpec((tm, tn), lambda i, j, k: (i, j)),
            scratch_shapes=[pltpu.VMEM((tm, tn), jnp.float32)],
        ),
        compiler_params=pltpu.CompilerParams(
            dimension_semantics=("parallel", "parallel", "arbitrary"),
            vmem_limit_bytes=vmem_limit),
        cost_estimate=pl.CostEstimate(flops=flops, transcendentals=0,
                                      bytes_accessed=bytes_accessed),
    )(x_p, p["w_p"], xu_p, p["lvt_p"])

    return out[:M, :out_features].reshape(*lead, out_features)


def build_svd_lora_params(key, in_features, out_features, rank,
                          dtype=jnp.float32):
    """Deterministic parameter setup mirroring SVDLoRA.init_with_weight.

    Equivalent of an nn.Linear weight (out, in); SVD taken of weight.T.
    (Plain-JAX glue, not part of the hot path.)
    """
    w = jax.random.normal(key, (out_features, in_features), dtype=jnp.float32)
    u, s, vt = jnp.linalg.svd(w.T, full_matrices=False)  # u:(in,k) s:(k,) vt:(k,out)
    lora_u = u[:, -rank:]
    lora_s = s[-rank:]
    lora_vt = vt[-rank:, :]
    orig_weight = (u[:, :-rank] * s[:-rank][None, :]) @ vt[:-rank, :]
    return (orig_weight.astype(dtype), lora_u.astype(dtype),
            lora_s.astype(dtype), lora_vt.astype(dtype))


if __name__ == "__main__":
    # Small shapes consistent with a Linear/Conv1D projection:
    batch, seq, in_features, out_features, rank = 2, 8, 32, 32, 4

    key = jax.random.PRNGKey(0)
    k_w, k_x = jax.random.split(key)

    orig_weight, lora_u, lora_s, lora_vt = build_svd_lora_params(
        k_w, in_features, out_features, rank)
    x = jax.random.normal(k_x, (batch, seq, in_features), dtype=jnp.float32)

    # Pure-JAX reference (same math as the PyTorch forward).
    y_ref = x @ orig_weight + ((x @ lora_u) * lora_s) @ lora_vt

    # f32 path: exact semantics, tight tolerance.
    params_f32 = prepare_svd_lora(orig_weight, lora_u, lora_s, lora_vt)
    y = jax.block_until_ready(svd_lora_forward(x, params_f32))
    np.testing.assert_allclose(np.asarray(y), np.asarray(y_ref),
                               rtol=1e-4, atol=1e-4)

    # bf16 MXU fast path (v5e/v6e/v7x): f32 accumulation, loose tolerance.
    params_bf16 = prepare_svd_lora(orig_weight, lora_u, lora_s, lora_vt,
                                   compute_dtype=jnp.bfloat16)
    y_bf16 = jax.block_until_ready(svd_lora_forward(x, params_bf16))
    np.testing.assert_allclose(np.asarray(y_bf16), np.asarray(y_ref),
                               rtol=5e-2, atol=5e-1)

    print("KERNEL_OK")
</pallas_src>

<mosaic_0001>
module attributes {stable_mosaic.version = 11 : i64} {
  func.func @_svd_lora_kernel(%arg0: i32, %arg1: i32, %arg2: i32, %arg3: memref<16x128xf32, #tpu.memory_space<vmem>>, %arg4: memref<128x128xf32, #tpu.memory_space<vmem>>, %arg5: memref<16x8xf32, #tpu.memory_space<vmem>>, %arg6: memref<8x128xf32, #tpu.memory_space<vmem>>, %arg7: memref<16x128xf32, #tpu.memory_space<vmem>>, %arg8: memref<16x128xf32, #tpu.memory_space<vmem>>) attributes {dimension_semantics = [#tpu.dimension_semantics<parallel>, #tpu.dimension_semantics<parallel>, #tpu.dimension_semantics<arbitrary>], iteration_bounds = array<i64: 1, 1, 1>, scalar_prefetch = 0 : i64, scratch_operands = 1 : i64, tpu.core_type = #tpu.core_type<tc>, window_params = [{transform_indices = @transform_0, window_bounds = array<i64: 16, 128>}, {transform_indices = @transform_1, window_bounds = array<i64: 128, 128>}, {transform_indices = @transform_2, window_bounds = array<i64: 16, 8>}, {transform_indices = @transform_3, window_bounds = array<i64: 8, 128>}, {transform_indices = @transform_4, window_bounds = array<i64: 16, 128>}]} {
    %c0_i32 = arith.constant 0 : i32
    %0 = arith.cmpi eq, %arg2, %c0_i32 : i32
    %1 = arith.extui %0 : i1 to i32
    %c0_i32_0 = arith.constant 0 : i32
    %2 = arith.cmpi ne, %1, %c0_i32_0 : i32
    scf.if %2 {
      %c0_10 = arith.constant 0 : index
      %c0_11 = arith.constant 0 : index
      %12 = vector.load %arg5[%c0_10, %c0_11] : memref<16x8xf32, #tpu.memory_space<vmem>>, vector<16x8xf32>
      %c0_12 = arith.constant 0 : index
      %c0_13 = arith.constant 0 : index
      %13 = vector.load %arg6[%c0_12, %c0_13] : memref<8x128xf32, #tpu.memory_space<vmem>>, vector<8x128xf32>
      %cst_14 = arith.constant dense<0.000000e+00> : vector<16x128xf32>
      %14 = tpu.matmul %12, %13, %cst_14 {dimension_numbers = #tpu.dot_dimension_numbers<[1], [0], [0], [1], [0, 0, 1, 1], [], []>} : vector<16x8xf32>, vector<8x128xf32>, vector<16x128xf32> -> vector<16x128xf32>
      %c0_15 = arith.constant 0 : index
      %c0_16 = arith.constant 0 : index
      %15 = vector.load %arg8[%c0_15, %c0_16] : memref<16x128xf32, #tpu.memory_space<vmem>>, vector<16x128xf32>
      tpu.vector_store %arg8[%c0_15, %c0_16], %14 {strides = array<i32>} : memref<16x128xf32, #tpu.memory_space<vmem>>, vector<16x128xf32>,
    } else {
    }
    %c0 = arith.constant 0 : index
    %c0_1 = arith.constant 0 : index
    %3 = vector.load %arg8[%c0, %c0_1] : memref<16x128xf32, #tpu.memory_space<vmem>>, vector<16x128xf32>
    %c0_2 = arith.constant 0 : index
    %c0_3 = arith.constant 0 : index
    %4 = vector.load %arg3[%c0_2, %c0_3] : memref<16x128xf32, #tpu.memory_space<vmem>>, vector<16x128xf32>
    %c0_4 = arith.constant 0 : index
    %c0_5 = arith.constant 0 : index
    %5 = vector.load %arg4[%c0_4, %c0_5] : memref<128x128xf32, #tpu.memory_space<vmem>>, vector<128x128xf32>
    %cst = arith.constant dense<0.000000e+00> : vector<16x128xf32>
    %6 = tpu.matmul %4, %5, %cst {dimension_numbers = #tpu.dot_dimension_numbers<[1], [0], [0], [1], [0, 0, 1, 1], [], []>} : vector<16x128xf32>, vector<128x128xf32>, vector<16x128xf32> -> vector<16x128xf32>
    %7 = arith.addf %3, %6 : vector<16x128xf32>
    %c0_6 = arith.constant 0 : index
    %c0_7 = arith.constant 0 : index
    %8 = vector.load %arg8[%c0_6, %c0_7] : memref<16x128xf32, #tpu.memory_space<vmem>>, vector<16x128xf32>
    tpu.vector_store %arg8[%c0_6, %c0_7], %7 {strides = array<i32>} : memref<16x128xf32, #tpu.memory_space<vmem>>, vector<16x128xf32>,
    %c0_i32_8 = arith.constant 0 : i32
    %9 = arith.cmpi eq, %arg2, %c0_i32_8 : i32
    %10 = arith.extui %9 : i1 to i32
    %c0_i32_9 = arith.constant 0 : i32
    %11 = arith.cmpi ne, %10, %c0_i32_9 : i32
    scf.if %11 {
      %c0_10 = arith.constant 0 : index
      %c0_11 = arith.constant 0 : index
      %12 = vector.load %arg8[%c0_10, %c0_11] : memref<16x128xf32, #tpu.memory_space<vmem>>, vector<16x128xf32>
      %c0_12 = arith.constant 0 : index
      %c0_13 = arith.constant 0 : index
      %13 = vector.load %arg7[%c0_12, %c0_13] : memref<16x128xf32, #tpu.memory_space<vmem>>, vector<16x128xf32>
      tpu.vector_store %arg7[%c0_12, %c0_13], %12 {strides = array<i32>} : memref<16x128xf32, #tpu.memory_space<vmem>>, vector<16x128xf32>,
    } else {
    }
    return
  }
  func.func @transform_0(%arg0: i32, %arg1: i32, %arg2: i32) -> (i32, i32) {
    %c0_i32 = arith.constant 0 : i32
    return %arg0, %arg2 : i32, i32
  }
  func.func @transform_1(%arg0: i32, %arg1: i32, %arg2: i32) -> (i32, i32) {
    %c0_i32 = arith.constant 0 : i32
    return %arg2, %arg1 : i32, i32
  }
  func.func @transform_2(%arg0: i32, %arg1: i32, %arg2: i32) -> (i32, i32) {
    %c0_i32 = arith.constant 0 : i32
    %c0_i32_0 = arith.constant 0 : i32
    return %arg0, %c0_i32 : i32, i32
  }
  func.func @transform_3(%arg0: i32, %arg1: i32, %arg2: i32) -> (i32, i32) {
    %c0_i32 = arith.constant 0 : i32
    %c0_i32_0 = arith.constant 0 : i32
    return %c0_i32, %arg1 : i32, i32
  }
  func.func @transform_4(%arg0: i32, %arg1: i32, %arg2: i32) -> (i32, i32) {
    %c0_i32 = arith.constant 0 : i32
    return %arg0, %arg1 : i32, i32
  }
}

</mosaic_0001>

<llo_original>
// kernel: tpu_custom_call.1
$region0: #{tpu_custom_call.1}
  #allocation0 [shape = 'u32[]', space=smem, size = 0x4, offset = 0x4, fixed_abs, tag = 'smem constant byte address 0x4 - core index']
  #allocation1 [shape = 'u32[144,128]{1,0:T(1,128)}', space=vmem, size = 0x12000, scoped, tag = 'internal scratch']
  #allocation2 [shape = 'f32[16,128]{1,0:T(8,128)}', space=vmem, size = 0x2000, scoped, tag = 'scratch operand']
  %s0 = inlined_call_operand.vmem [shape: f32[16,128], index: 0, kind: input, shape index: {}]
  %s1 = inlined_call_operand.hbm [shape: f32[128,128], index: 1, kind: input, shape index: {}]
  %s2 = inlined_call_operand.vmem [shape: f32[16,8], index: 2, kind: input, shape index: {}]
  %s3 = inlined_call_operand.vmem [shape: f32[8,128], index: 3, kind: input, shape index: {}]
  %s4 = inlined_call_operand.hbm [shape: f32[16,128], index: 4, kind: output, shape index: {}]
  %s5 = sld [smem:[#allocation0]]
  $region38: #{tpu_custom_call.1} parent=0
    _
  %s7 = ssub.s32 1, %s5
  %s8 = scalar_select 0, %s7, %s5
  $region1: #{tpu_custom_call.1} parent=0
    #allocation3 [shape = 'u8[65536]{0}', space=vmem, size = 0x10000, scoped, tag = 'input window, operand 1, single buffered']
    #allocation4 [shape = 's32[1]{0}', space=sflag, size = 0x4, scoped, tag = 'scoped memory for tpu_custom_call.1']
    #allocation5 [shape = 's32[1]{0}', space=sflag, size = 0x4, scoped, tag = 'scoped memory for tpu_custom_call.1']
    #allocation6 [shape = 'u8[8192]{0}', space=vmem, size = 0x2000, scoped, tag = 'output window, operand 0, single buffered']
    %9 = vsyncpa [#allocation4], 0
    %10 = vsyncpa [#allocation5], 0
    // Predicated region
    $region2: #{tpu_custom_call.1} parent=1 // pred_check
      _
    $region3: #{tpu_custom_call.1} parent=1 // pred_check_branch
      %12 = sbr.rel (0) target = $region5
    $region4: #{tpu_custom_call.1} parent=1 // pred_region
      _
    $region5: #{tpu_custom_call.1} parent=1 // pred_fallthru
      _
    // Predicated region
    $region6: #{tpu_custom_call.1} parent=1 // pred_check
      _
    $region7: #{tpu_custom_call.1} parent=1 // pred_check_branch
      %14 = sbr.rel (0) target = $region9
    $region8: #{tpu_custom_call.1} parent=1 // pred_region
      %s16 = ssub.s32 2048, 2048
      %17 = vsyncadd [#allocation4], %s16
      %s18 = sshll.u32 [#allocation3], 4
      %s19 = int_to_ptr.vmem [resolvable:$true] %s18
      %24 = dma.hbm_to_vmem [thread:$0]  %s1, 2048, %s19, [#allocation4], 128, 128, 8
    $region9: #{tpu_custom_call.1} parent=1 // pred_fallthru
      _
    // Predicated region
    $region10: #{tpu_custom_call.1} parent=1 // pred_check
      _
    $region11: #{tpu_custom_call.1} parent=1 // pred_check_branch
      %26 = sbr.rel (0) target = $region13
    $region12: #{tpu_custom_call.1} parent=1 // pred_region
      _
    $region13: #{tpu_custom_call.1} parent=1 // pred_fallthru
      _
    // Predicated region
    $region14: #{tpu_custom_call.1} parent=1 // pred_check
      _
    $region15: #{tpu_custom_call.1} parent=1 // pred_check_branch
      %28 = sbr.rel (0) target = $region17
    $region16: #{tpu_custom_call.1} parent=1 // pred_region
      _
    $region17: #{tpu_custom_call.1} parent=1 // pred_fallthru
      _
    // Predicated region
    $region18: #{tpu_custom_call.1} parent=1 // pred_check
      _
    $region19: #{tpu_custom_call.1} parent=1 // pred_check_branch
      %30 = sbr.rel (0) target = $region21
    $region20: #{tpu_custom_call.1} parent=1 // pred_region
      %31 = dma.done [#allocation4], 2048
    $region21: #{tpu_custom_call.1} parent=1 // pred_fallthru
      _
    %p32 = scmp.eq.s32.totalorder 0, 0
    // Predicated region
    $region22: #{tpu_custom_call.1} parent=1 // pred_check
      %p33 = pneg %p32
    $region23: #{tpu_custom_call.1} parent=1 // pred_check_branch
      %35 = sbr.rel (%p33) target = $region25
    $region24: #{tpu_custom_call.1} parent=1 // pred_region
      %v36 = vld [vmem:[%s2] sm:$0xff]
      %v37 = vld [vmem:[%s2 + $0x8] sm:$0xff]
      %v38 = vld [vmem:[%s3] sm:$0xff]
      %vm39 = vcmask 64512
      %v41 = vsel %vm39, %v36, 0
      %v44 = vsel %vm39, %v37, 0
      %46 = vmatprep.subr.mxu0 0.0
      %47 = vmatpush1.msra.mxu0 0.0
      %48 = vmatprep.subr.mxu0 0.0
      %49 = vmatpush1.msra.mxu0 0.0
      %50 = vmatprep.subr.mxu0 0.0
      %51 = vmatpush1.msra.mxu0 0.0
      %52 = vmatprep.subr.mxu0 0.0
      %53 = vmatpush1.msra.mxu0 0.0
      %54 = vmatprep.subr.mxu0 0.0
      %55 = vmatpush1.msra.mxu0 0.0
      %56 = vmatprep.subr.mxu0 0.0
      %57 = vmatpush1.msra.mxu0 0.0
      %58 = vmatprep.subr.mxu0 0.0
      %59 = vmatpush1.msra.mxu0 0.0
      %60 = vmatprep.subr.mxu0 0.0
      %61 = vmatpush1.msra.mxu0 0.0
      %62 = vmatprep.subr.mxu0 0.0
      %63 = vmatpush1.msra.mxu0 0.0
      %64 = vmatprep.subr.mxu0 0.0
      %65 = vmatpush1.msra.mxu0 0.0
      %66 = vmatprep.subr.mxu0 0.0
      %67 = vmatpush1.msra.mxu0 0.0
      %68 = vmatprep.subr.mxu0 0.0
      %69 = vmatpush1.msra.mxu0 0.0
      %70 = vmatprep.subr.mxu0 0.0
      %71 = vmatpush1.msra.mxu0 0.0
      %72 = vmatprep.subr.mxu0 0.0
      %73 = vmatpush1.msra.mxu0 0.0
      %74 = vmatprep.subr.mxu0 0.0
      %75 = vmatpush1.msra.mxu0 0.0
      %76 = vmatprep.subr.mxu0 0.0
      %77 = vmatpush1.msra.mxu0 %v38
      %78 = vmatprep.subr.mxu0 0.0
      %79 = vmatpush2.msra.mxu0 0.0
      %80 = vmatprep.subr.mxu0 0.0
      %81 = vmatpush2.msra.mxu0 0.0
      %82 = vmatprep.subr.mxu0 0.0
      %83 = vmatpush2.msra.mxu0 0.0
      %84 = vmatprep.subr.mxu0 0.0
      %85 = vmatpush2.msra.mxu0 0.0
      %86 = vmatprep.subr.mxu0 0.0
      %87 = vmatpush2.msra.mxu0 0.0
      %88 = vmatprep.subr.mxu0 0.0
      %89 = vmatpush2.msra.mxu0 0.0
      %90 = vmatprep.subr.mxu0 0.0
      %91 = vmatpush2.msra.mxu0 0.0
      %92 = vmatprep.subr.mxu0 0.0
      %93 = vmatpush2.msra.mxu0 0.0
      %94 = vmatprep.subr.mxu0 0.0
      %95 = vmatpush2.msra.mxu0 0.0
      %96 = vmatprep.subr.mxu0 0.0
      %97 = vmatpush2.msra.mxu0 0.0
      %98 = vmatprep.subr.mxu0 0.0
      %99 = vmatpush2.msra.mxu0 0.0
      %100 = vmatprep.subr.mxu0 0.0
      %101 = vmatpush2.msra.mxu0 0.0
      %102 = vmatprep.subr.mxu0 0.0
      %103 = vmatpush2.msra.mxu0 0.0
      %104 = vmatprep.subr.mxu0 0.0
      %105 = vmatpush2.msra.mxu0 0.0
      %106 = vmatprep.subr.mxu0 0.0
      %107 = vmatpush2.msra.mxu0 0.0
      %108 = vmatprep.subr.mxu0 0.0
      %109 = vmatpush2.msra.mxu0 0.0
      %110 = vmatprep.mubr.f32.mxu0 0.0
      %111 = vmatmul.mubr.f32.gmra.mxu0 %v41
      %v112 = vpop.f32.mrf.mxu0
      %v113 = vadd.f32 0.0, %v112
      %v114 = vpop.f32.mrf.mxu0
      %115 = vmatprep.mubr.f32.mxu0 0.0
      %116 = vmatmul.mubr.f32.gmra.mxu0 %v44
      %v117 = vpop.f32.mrf.mxu0
      %v118 = vadd.f32 0.0, %v117
      %v119 = vpop.f32.mrf.mxu0
      %120 = vdwg.mxu0
      %121 = vst [vmem:[#allocation2] sm:$0xff] %v113
      %122 = vst [vmem:[#allocation2 + $0x8] sm:$0xff] %v118
    $region25: #{tpu_custom_call.1} parent=1 // pred_fallthru
      _
    %v123 = vld [vmem:[#allocation2] sm:$0xff]
    %v124 = vld [vmem:[#allocation2 + $0x8] sm:$0xff]
    %v125 = vld [vmem:[%s0] sm:$0xff]
    %v126 = vld [vmem:[%s0 + $0x8] sm:$0xff]
    %v127 = vld [vmem:[#allocation3] sm:$0xff]
    %v128 = vld [vmem:[#allocation3 + $0x8] sm:$0xff]
    %v129 = vld [vmem:[#allocation3 + $0x10] sm:$0xff]
    %v130 = vld [vmem:[#allocation3 + $0x18] sm:$0xff]
    %v131 = vld [vmem:[#allocation3 + $0x20] sm:$0xff]
    %v132 = vld [vmem:[#allocation3 + $0x28] sm:$0xff]
    %v133 = vld [vmem:[#allocation3 + $0x30] sm:$0xff]
    %v134 = vld [vmem:[#allocation3 + $0x38] sm:$0xff]
    %v135 = vld [vmem:[#allocation3 + $0x40] sm:$0xff]
    %v136 = vld [vmem:[#allocation3 + $0x48] sm:$0xff]
    %v137 = vld [vmem:[#allocation3 + $0x50] sm:$0xff]
    %v138 = vld [vmem:[#allocation3 + $0x58] sm:$0xff]
    %v139 = vld [vmem:[#allocation3 + $0x60] sm:$0xff]
    %v140 = vld [vmem:[#allocation3 + $0x68] sm:$0xff]
    %v141 = vld [vmem:[#allocation3 + $0x70] sm:$0xff]
    %v142 = vld [vmem:[#allocation3 + $0x78] sm:$0xff]
    %143 = vmatprep.subr.mxu0 0.0
    %144 = vmatpush1.msra.mxu0 %v142
    %145 = vmatprep.subr.mxu0 0.0
    %146 = vmatpush1.msra.mxu0 %v141
    %147 = vmatprep.subr.mxu0 0.0
    %148 = vmatpush1.msra.mxu0 %v140
    %149 = vmatprep.subr.mxu0 0.0
    %150 = vmatpush1.msra.mxu0 %v139
    %151 = vmatprep.subr.mxu0 0.0
    %152 = vmatpush1.msra.mxu0 %v138
    %153 = vmatprep.subr.mxu0 0.0
    %154 = vmatpush1.msra.mxu0 %v137
    %155 = vmatprep.subr.mxu0 0.0
    %156 = vmatpush1.msra.mxu0 %v136
    %157 = vmatprep.subr.mxu0 0.0
    %158 = vmatpush1.msra.mxu0 %v135
    %159 = vmatprep.subr.mxu0 0.0
    %160 = vmatpush1.msra.mxu0 %v134
    %161 = vmatprep.subr.mxu0 0.0
    %162 = vmatpush1.msra.mxu0 %v133
    %163 = vmatprep.subr.mxu0 0.0
    %164 = vmatpush1.msra.mxu0 %v132
    %165 = vmatprep.subr.mxu0 0.0
    %166 = vmatpush1.msra.mxu0 %v131
    %167 = vmatprep.subr.mxu0 0.0
    %168 = vmatpush1.msra.mxu0 %v130
    %169 = vmatprep.subr.mxu0 0.0
    %170 = vmatpush1.msra.mxu0 %v129
    %171 = vmatprep.subr.mxu0 0.0
    %172 = vmatpush1.msra.mxu0 %v128
    %173 = vmatprep.subr.mxu0 0.0
    %174 = vmatpush1.msra.mxu0 %v127
    %175 = vmatprep.subr.mxu0 0.0
    %176 = vmatpush2.msra.mxu0 0.0
    %177 = vmatprep.subr.mxu0 0.0
    %178 = vmatpush2.msra.mxu0 0.0
    %179 = vmatprep.subr.mxu0 0.0
    %180 = vmatpush2.msra.mxu0 0.0
    %181 = vmatprep.subr.mxu0 0.0
    %182 = vmatpush2.msra.mxu0 0.0
    %183 = vmatprep.subr.mxu0 0.0
    %184 = vmatpush2.msra.mxu0 0.0
    %185 = vmatprep.subr.mxu0 0.0
    %186 = vmatpush2.msra.mxu0 0.0
    %187 = vmatprep.subr.mxu0 0.0
    %188 = vmatpush2.msra.mxu0 0.0
    %189 = vmatprep.subr.mxu0 0.0
    %190 = vmatpush2.msra.mxu0 0.0
    %191 = vmatprep.subr.mxu0 0.0
    %192 = vmatpush2.msra.mxu0 0.0
    %193 = vmatprep.subr.mxu0 0.0
    %194 = vmatpush2.msra.mxu0 0.0
    %195 = vmatprep.subr.mxu0 0.0
    %196 = vmatpush2.msra.mxu0 0.0
    %197 = vmatprep.subr.mxu0 0.0
    %198 = vmatpush2.msra.mxu0 0.0
    %199 = vmatprep.subr.mxu0 0.0
    %200 = vmatpush2.msra.mxu0 0.0
    %201 = vmatprep.subr.mxu0 0.0
    %202 = vmatpush2.msra.mxu0 0.0
    %203 = vmatprep.subr.mxu0 0.0
    %204 = vmatpush2.msra.mxu0 0.0
    %205 = vmatprep.subr.mxu0 0.0
    %206 = vmatpush2.msra.mxu0 0.0
    %207 = vmatprep.mubr.f32.mxu0 0.0
    %208 = vmatmul.mubr.f32.gmra.mxu0 %v125
    %v209 = vpop.f32.mrf.mxu0
    %v210 = vadd.f32 0.0, %v209
    %v211 = vpop.f32.mrf.mxu0
    %212 = vmatprep.mubr.f32.mxu0 0.0
    %213 = vmatmul.mubr.f32.gmra.mxu0 %v126
    %v214 = vpop.f32.mrf.mxu0
    %v215 = vadd.f32 0.0, %v214
    %v216 = vpop.f32.mrf.mxu0
    %217 = vdwg.mxu0
    %v218 = vadd.f32 %v123, %v210
    %v219 = vadd.f32 %v124, %v215
    %220 = vst [vmem:[#allocation2] sm:$0xff] %v218
    %221 = vst [vmem:[#allocation2 + $0x8] sm:$0xff] %v219
    // Predicated region
    $region26: #{tpu_custom_call.1} parent=1 // pred_check
      %p222 = pneg %p32
    $region27: #{tpu_custom_call.1} parent=1 // pred_check_branch
      %224 = sbr.rel (%p222) target = $region29
    $region28: #{tpu_custom_call.1} parent=1 // pred_region
      %v225 = vld [vmem:[#allocation2] sm:$0xff]
      %v226 = vld [vmem:[#allocation2 + $0x8] sm:$0xff]
      %227 = vst [vmem:[#allocation6] sm:$0xff] %v225
      %228 = vst [vmem:[#allocation6 + $0x8] sm:$0xff] %v226
    $region29: #{tpu_custom_call.1} parent=1 // pred_fallthru
      _
    // Predicated region
    $region30: #{tpu_custom_call.1} parent=1 // pred_check
      _
    $region31: #{tpu_custom_call.1} parent=1 // pred_check_branch
      %230 = sbr.rel (0) target = $region33
    $region32: #{tpu_custom_call.1} parent=1 // pred_region
      %s232 = ssub.s32 256, 256
      %233 = vsyncadd [#allocation5], %s232
      %s234 = sshll.u32 [#allocation6], 4
      %s235 = int_to_ptr.vmem [resolvable:$true] %s234
      %240 = dma.vmem_to_hbm [thread:$0]  %s235, 256, %s4, [#allocation5], 128, 128, 8
    $region33: #{tpu_custom_call.1} parent=1 // pred_fallthru
      _
    // Predicated region
    $region34: #{tpu_custom_call.1} parent=1 // pred_check
      _
    $region35: #{tpu_custom_call.1} parent=1 // pred_check_branch
      %242 = sbr.rel (0) target = $region37
    $region36: #{tpu_custom_call.1} parent=1 // pred_region
      %243 = dma.done [#allocation5], 256
    $region37: #{tpu_custom_call.1} parent=1 // pred_fallthru
      _
    %244 = vsyncpa [#allocation4], 1
    %245 = vsyncpa [#allocation5], 1

</llo_original>
